<compile_context>
chip_gen: v5e
topology: v5e:2x2
jax: 0.10.0
libtpu: 0.0.40
codegen_flags: <defaults>
</compile_context>

<pallas_src>
import jax
import jax.numpy as jnp
from jax.experimental import pallas as pl
from jax.experimental.pallas import tpu as pltpu


def _vmem_capacity_bytes():
    try:
        return int(pltpu.get_tpu_info().vmem_capacity_bytes)
    except Exception:
        return 64 * 1024 * 1024  # conservative: v7x per-TC VMEM


def prepare_fc_params(w_pt, b):
    """One-time (model-setup) parameter prep; NOT part of the forward path.

    w_pt: PyTorch-layout weight (d_out, d_in), f32.
    Returns:
      w : (d_in, d_out) bf16 MXU operand.
      b2: (1, d_out) f32 bias row.
    """
    w = jnp.asarray(w_pt).T.astype(jnp.bfloat16)
    b2 = jnp.asarray(b, jnp.float32).reshape(1, -1)
    return w, b2


# ------------------------------ kernels ------------------------------------

def _fc_relu_kernel(x_ref, w_ref, b_ref, o_ref):
    # Grid-less small path: whole arrays resident in VMEM.
    x_bf = x_ref[...].astype(jnp.bfloat16)              # VPU cast, hidden by MXU/DMA
    acc = jnp.dot(x_bf, w_ref[...], preferred_element_type=jnp.float32)
    acc = acc + b_ref[...]                               # f32 bias broadcast
    o_ref[...] = jnp.maximum(acc, 0.0).astype(o_ref.dtype)


def _fc_relu_kernel_tiled(x_ref, w_ref, b_ref, o_ref, acc_ref):
    # Tiled path: grid = (batch, N, K); K is the reduction axis (last, "arbitrary").
    k = pl.program_id(2)

    @pl.when(k == 0)
    def _init():
        acc_ref[...] = jnp.zeros_like(acc_ref)

    x_bf = x_ref[...].astype(jnp.bfloat16)
    acc_ref[...] += jnp.dot(x_bf, w_ref[...], preferred_element_type=jnp.float32)

    @pl.when(k == pl.num_programs(2) - 1)
    def _epilogue():
        o_ref[...] = jnp.maximum(acc_ref[...] + b_ref[...], 0.0).astype(o_ref.dtype)


# ------------------------------ wrapper -------------------------------------

def fully_connected_block(x, w, b2, *, out_dtype=jnp.float32,
                          batch_tile=512, n_tile=512, k_tile=512):
    """y = relu(x @ w + b).

    x : (B, D_in) f32 (passed as-is; cast to bf16 in-kernel).
    w : (D_in, D_out) bf16  (from prepare_fc_params, prepared once).
    b2: (1, D_out) f32      (from prepare_fc_params).
    Returns (B, D_out) in out_dtype (use bf16 to halve output writeback).
    """
    B, D_in = x.shape
    D_out = w.shape[1]
    out_bytes = jnp.dtype(out_dtype).itemsize

    cost = pl.CostEstimate(
        flops=2 * B * D_in * D_out,
        bytes_accessed=(B * D_in * 4 + D_in * D_out * 2 + D_out * 4
                        + B * D_out * out_bytes),
        transcendentals=0)

    out_shape = jax.ShapeDtypeStruct((B, D_out), out_dtype)

    # ---- small / grid-less path: everything resident in VMEM, no pipeline ----
    resident = (B * D_in * 4 + D_in * D_out * 2 + D_out * 4 + B * D_out * out_bytes)
    vmem_budget = min(_vmem_capacity_bytes() // 2, 16 * 1024 * 1024)
    if 2 * resident <= vmem_budget:
        return pl.pallas_call(
            _fc_relu_kernel,
            out_shape=out_shape,
            in_specs=[
                pl.BlockSpec(memory_space=pltpu.MemorySpace.VMEM),
                pl.BlockSpec(memory_space=pltpu.MemorySpace.VMEM),
                pl.BlockSpec(memory_space=pltpu.MemorySpace.VMEM),
            ],
            out_specs=pl.BlockSpec(memory_space=pltpu.MemorySpace.VMEM),
            cost_estimate=cost,
        )(x, w, b2)

    # ---- tiled, pipelined path ----
    # Block shapes: full-extent dims are exempt from the (8,128) rule; tiled
    # dims are kept at 8/128 multiples (n_tile/k_tile/batch_tile are 128-mults).
    tb = batch_tile if B > batch_tile else B
    tn = n_tile if D_out > n_tile else D_out
    if D_in > k_tile and D_in % k_tile == 0:
        tk = k_tile            # only tile K when it divides (no ragged reduction)
    else:
        tk = D_in

    grid = (pl.cdiv(B, tb), pl.cdiv(D_out, tn), pl.cdiv(D_in, tk))
    nb, nn, nk = grid

    w_spec = pl.BlockSpec((tk, tn), lambda i, j, k: (k, j))
    b_spec = pl.BlockSpec((1, tn), lambda i, j, k: (0, j))
    w_bufs = 2
    if nn == 1 and nk == 1:
        # Constant blocks: single-buffer the largest resident tensor (weights)
        # and the bias; frees VMEM for larger batch tiles (critical on v7x).
        w_spec = pl.BlockSpec((tk, tn), lambda i, j, k: (k, j),
                              pipeline_mode=pl.Buffered(1))
        b_spec = pl.BlockSpec((1, tn), lambda i, j, k: (0, j),
                              pipeline_mode=pl.Buffered(1))
        w_bufs = 1

    # Explicit VMEM budget: 2x x-tile + 2x out-tile + weight buf(s) + bias + acc.
    vmem_bytes = (2 * tb * tk * 4
                  + 2 * tb * tn * out_bytes
                  + w_bufs * tk * tn * 2
                  + 2 * tn * 4
                  + tb * tn * 4)
    vmem_limit = int(min(max(int(vmem_bytes * 1.5), 32 * 1024 * 1024),
                         64 * 1024 * 1024))

    return pl.pallas_call(
        _fc_relu_kernel_tiled,
        out_shape=out_shape,
        grid_spec=pltpu.PrefetchScalarGridSpec(
            num_scalar_prefetch=0,
            grid=grid,
            in_specs=[
                pl.BlockSpec((tb, tk), lambda i, j, k: (i, k)),
                w_spec,
                b_spec,
            ],
            out_specs=pl.BlockSpec((tb, tn), lambda i, j, k: (i, j)),
            scratch_shapes=[pltpu.VMEM((tb, tn), jnp.float32)],
        ),
        compiler_params=pltpu.CompilerParams(
            dimension_semantics=("parallel", "parallel", "arbitrary"),
            vmem_limit_bytes=vmem_limit),
        cost_estimate=cost,
    )(x, w, b2)


if __name__ == "__main__":
    # Module config: FullyConnectedBlock(d_in=32, d_out=64)  (ReLU, dropout=0)
    d_in, d_out, batch = 32, 64, 8

    key = jax.random.PRNGKey(0)
    kx, kw, kb = jax.random.split(key, 3)

    # Deterministic PyTorch-style Linear init: U(-1/sqrt(d_in), 1/sqrt(d_in)).
    bound = 1.0 / (d_in ** 0.5)
    w_pt = jax.random.uniform(kw, (d_out, d_in), jnp.float32, -bound, bound)
    b = jax.random.uniform(kb, (d_out,), jnp.float32, -bound, bound)
    x = jax.random.normal(kx, (batch, d_in), jnp.float32)

    # One-time parameter prep (hoisted out of the per-call path).
    w, b2 = prepare_fc_params(w_pt, b)

    y = fully_connected_block(x, w, b2)
    jax.block_until_ready(y)

    # Reference with the same bf16 operand rounding + f32 accumulation.
    # NOTE: bf16 MXU operands differ slightly from a true f32 torch Linear;
    # tolerance documented here.
    x_bf = x.astype(jnp.bfloat16).astype(jnp.float32)
    w_bf = jnp.asarray(w_pt).T.astype(jnp.bfloat16).astype(jnp.float32)
    y_ref = jnp.maximum(x_bf @ w_bf + b, 0.0)

    assert y.shape == (batch, d_out)
    assert y.dtype == jnp.float32
    assert jnp.allclose(y, y_ref, atol=5e-3, rtol=5e-3)

    # TODO(synk): nn.Dropout is only instantiated when dropout != 0; the default
    # config has no dropout, so it is intentionally not implemented here.
    print("KERNEL_OK")
</pallas_src>

<mosaic_0001>
module attributes {stable_mosaic.version = 11 : i64} {
  func.func @_fc_relu_kernel(%arg0: memref<8x32xf32, #tpu.memory_space<vmem>>, %arg1: memref<32x64xbf16, #tpu.memory_space<vmem>>, %arg2: memref<1x64xf32, #tpu.memory_space<vmem>>, %arg3: memref<8x64xf32, #tpu.memory_space<vmem>>) attributes {dimension_semantics = [], scalar_prefetch = 0 : i64, scratch_operands = 0 : i64, tpu.core_type = #tpu.core_type<tc>} {
    %c0 = arith.constant 0 : index
    %c0_0 = arith.constant 0 : index
    %0 = vector.load %arg0[%c0, %c0_0] : memref<8x32xf32, #tpu.memory_space<vmem>>, vector<8x32xf32>
    %1 = arith.truncf %0 : vector<8x32xf32> to vector<8x32xbf16>
    %c0_1 = arith.constant 0 : index
    %c0_2 = arith.constant 0 : index
    %2 = vector.load %arg1[%c0_1, %c0_2] : memref<32x64xbf16, #tpu.memory_space<vmem>>, vector<32x64xbf16>
    %cst = arith.constant dense<0.000000e+00> : vector<8x64xf32>
    %3 = tpu.matmul %1, %2, %cst {dimension_numbers = #tpu.dot_dimension_numbers<[1], [0], [0], [1], [0, 0, 1, 1], [], []>} : vector<8x32xbf16>, vector<32x64xbf16>, vector<8x64xf32> -> vector<8x64xf32>
    %c0_3 = arith.constant 0 : index
    %c0_4 = arith.constant 0 : index
    %4 = vector.load %arg2[%c0_3, %c0_4] : memref<1x64xf32, #tpu.memory_space<vmem>>, vector<1x64xf32>
    %5 = vector.broadcast %4 : vector<1x64xf32> to vector<8x64xf32>
    %6 = arith.addf %3, %5 : vector<8x64xf32>
    %cst_5 = arith.constant 0.000000e+00 : f32
    %7 = vector.broadcast %cst_5 : f32 to vector<8x64xf32>
    %8 = arith.maximumf %6, %7 : vector<8x64xf32>
    %c0_6 = arith.constant 0 : index
    %c0_7 = arith.constant 0 : index
    %9 = vector.load %arg3[%c0_6, %c0_7] : memref<8x64xf32, #tpu.memory_space<vmem>>, vector<8x64xf32>
    tpu.vector_store %arg3[%c0_6, %c0_7], %8 {strides = array<i32>} : memref<8x64xf32, #tpu.memory_space<vmem>>, vector<8x64xf32>,
    return
  }
}

</mosaic_0001>

<llo_original>
// kernel: tpu_custom_call.1
$region0: #{tpu_custom_call.1}
  #allocation0 [shape = 'u32[]', space=smem, size = 0x4, offset = 0x4, fixed_abs, tag = 'smem constant byte address 0x4 - core index']
  #allocation1 [shape = 'u32[72,128]{1,0:T(1,128)}', space=vmem, size = 0x9000, scoped, tag = 'internal scratch']
  %s0 = inlined_call_operand.hbm [shape: f32[8,32], index: 0, kind: input, shape index: {}]
  %s1 = inlined_call_operand.hbm [shape: bf16[32,64], index: 1, kind: input, shape index: {}]
  %s2 = inlined_call_operand.vmem [shape: f32[1,64], index: 2, kind: input, shape index: {}]
  %s3 = inlined_call_operand.hbm [shape: f32[8,64], index: 3, kind: output, shape index: {}]
  %s4 = sld [smem:[#allocation0]]
  $region30: #{tpu_custom_call.1} parent=0
    _
  %s6 = ssub.s32 1, %s4
  %s7 = scalar_select 0, %s6, %s4
  $region1: #{tpu_custom_call.1} parent=0
    #allocation2 [shape = 'u8[4096]{0}', space=vmem, size = 0x1000, scoped, tag = 'input window, operand 0, single buffered']
    #allocation3 [shape = 's32[1]{0}', space=sflag, size = 0x4, scoped, tag = 'scoped memory for tpu_custom_call.1']
    #allocation4 [shape = 's32[1]{0}', space=sflag, size = 0x4, scoped, tag = 'scoped memory for tpu_custom_call.1']
    #allocation5 [shape = 'u8[8192]{0}', space=vmem, size = 0x2000, scoped, tag = 'input window, operand 1, single buffered']
    #allocation6 [shape = 's32[1]{0}', space=sflag, size = 0x4, scoped, tag = 'scoped memory for tpu_custom_call.1']
    #allocation7 [shape = 'u8[4096]{0}', space=vmem, size = 0x1000, scoped, tag = 'output window, operand 0, single buffered']
    %8 = vsyncpa [#allocation3], 0
    %9 = vsyncpa [#allocation6], 0
    %10 = vsyncpa [#allocation4], 0
    // Predicated region
    $region2: #{tpu_custom_call.1} parent=1 // pred_check
      _
    $region3: #{tpu_custom_call.1} parent=1 // pred_check_branch
      %12 = sbr.rel (0) target = $region5
    $region4: #{tpu_custom_call.1} parent=1 // pred_region
      %14 = vsyncadd [#allocation3], 0
      %s16 = sshll.u32 %s0, 4
      %s17 = int_to_ptr.hbm [resolvable:$true] %s16
      %s18 = sshll.u32 [#allocation2], 4
      %s19 = int_to_ptr.vmem [resolvable:$true] %s18
      %21 = dma.hbm_to_vmem [thread:$0]  %s17, 128, %s19, [#allocation3]
    $region5: #{tpu_custom_call.1} parent=1 // pred_fallthru
      _
    // Predicated region
    $region6: #{tpu_custom_call.1} parent=1 // pred_check
      _
    $region7: #{tpu_custom_call.1} parent=1 // pred_check_branch
      %23 = sbr.rel (0) target = $region9
    $region8: #{tpu_custom_call.1} parent=1 // pred_region
      %25 = vsyncadd [#allocation6], 0
      %s26 = sshll.u32 %s1, 4
      %s27 = int_to_ptr.hbm [resolvable:$true] %s26
      %s28 = sshll.u32 [#allocation5], 4
      %s29 = int_to_ptr.vmem [resolvable:$true] %s28
      %34 = dma.hbm_to_vmem [thread:$0]  %s27, 256, %s29, [#allocation6], 64, 64, 4
    $region9: #{tpu_custom_call.1} parent=1 // pred_fallthru
      _
    // Predicated region
    $region10: #{tpu_custom_call.1} parent=1 // pred_check
      _
    $region11: #{tpu_custom_call.1} parent=1 // pred_check_branch
      %36 = sbr.rel (0) target = $region13
    $region12: #{tpu_custom_call.1} parent=1 // pred_region
      _
    $region13: #{tpu_custom_call.1} parent=1 // pred_fallthru
      _
    // Predicated region
    $region14: #{tpu_custom_call.1} parent=1 // pred_check
      _
    $region15: #{tpu_custom_call.1} parent=1 // pred_check_branch
      %38 = sbr.rel (0) target = $region17
    $region16: #{tpu_custom_call.1} parent=1 // pred_region
      %40 = dma.done [#allocation3], 128
    $region17: #{tpu_custom_call.1} parent=1 // pred_fallthru
      _
    // Predicated region
    $region18: #{tpu_custom_call.1} parent=1 // pred_check
      _
    $region19: #{tpu_custom_call.1} parent=1 // pred_check_branch
      %42 = sbr.rel (0) target = $region21
    $region20: #{tpu_custom_call.1} parent=1 // pred_region
      %44 = dma.done [#allocation6], 256
    $region21: #{tpu_custom_call.1} parent=1 // pred_fallthru
      _
    %v46 = vld [vmem:[#allocation2] sm:$0xff]
    %v47 = vpack.c.bf16 %v46, %v46
    %v48 = vld [vmem:[#allocation5] sm:$0xf]
    %v49 = vld [vmem:[#allocation5 + $0x4] sm:$0xf]
    %v50 = vld [vmem:[#allocation5 + $0x8] sm:$0xf]
    %v51 = vld [vmem:[#allocation5 + $0xc] sm:$0xf]
    %v52 = vld [vmem:[%s2] sm:$0x1]
    %v54 = vperm.slane %v52, 0
    %v60 = vunpack.c.l.b16 %v48
    %v61 = vunpack.c.l.b16 %v49
    %v62 = vunpack.c.l.b16 %v50
    %v63 = vunpack.c.l.b16 %v51
    %v64 = vpack.c.b16 %v61, %v60
    %v65 = vpack.c.b16 %v63, %v62
    %vm68 = vcmask 261120
    %v70 = vsel %vm68, %v47, 0
    %72 = vmatpush.bf16.msra.mxu0 0
    %73 = vmatpush.bf16.msra.mxu0 0
    %74 = vmatpush.bf16.msra.mxu0 0
    %75 = vmatpush.bf16.msra.mxu0 0
    %76 = vmatpush.bf16.msra.mxu0 0
    %77 = vmatpush.bf16.msra.mxu0 0
    %78 = vmatpush.bf16.msra.mxu0 %v65
    %79 = vmatpush.bf16.msra.mxu0 %v64
    %80 = vmatmul.bf16.gmra.mxu0 %v70
    %v81 = vpop.f32.mrf.mxu0
    %v82 = vadd.f32 %v54, %v81
    %v83 = vpop.f32.mrf.mxu0
    %84 = vdwg.mxu0
    %v85 = vmax.f32 %v82, 0.0
    %vm86 = vcmask 523264
    %87 = vst.msk [vmem:[#allocation7] sm:$0xff] %vm86, %v85
    // Predicated region
    $region22: #{tpu_custom_call.1} parent=1 // pred_check
      _
    $region23: #{tpu_custom_call.1} parent=1 // pred_check_branch
      %89 = sbr.rel (0) target = $region25
    $region24: #{tpu_custom_call.1} parent=1 // pred_region
      %91 = vsyncadd [#allocation4], 0
      %s93 = sshll.u32 [#allocation7], 4
      %s94 = int_to_ptr.vmem [resolvable:$true] %s93
      %s95 = sshll.u32 %s3, 4
      %s96 = int_to_ptr.hbm [resolvable:$true] %s95
      %98 = dma.vmem_to_hbm [thread:$0]  %s94, 128, %s96, [#allocation4]
    $region25: #{tpu_custom_call.1} parent=1 // pred_fallthru
      _
    // Predicated region
    $region26: #{tpu_custom_call.1} parent=1 // pred_check
      _
    $region27: #{tpu_custom_call.1} parent=1 // pred_check_branch
      %100 = sbr.rel (0) target = $region29
    $region28: #{tpu_custom_call.1} parent=1 // pred_region
      %102 = dma.done [#allocation4], 128
    $region29: #{tpu_custom_call.1} parent=1 // pred_fallthru
      _
    %103 = vsyncpa [#allocation3], 1
    %104 = vsyncpa [#allocation6], 1
    %105 = vsyncpa [#allocation4], 1

</llo_original>
